<compile_context>
chip_gen: v7x
topology: tpu7x:2x2x1
jax: 0.10.0
libtpu: 0.0.40
codegen_flags: <defaults>
</compile_context>

<pallas_src>
import numpy as np
import jax
import jax.numpy as jnp
from jax.experimental import pallas as pl
from jax.experimental.pallas import tpu as pltpu

_HPAD = 128  # hidden dims padded to one full lane width


def _round_up(n, m):
    return ((n + m - 1) // m) * m


def _leaky_relu(x, slope=0.01):
    return jnp.where(x > 0, x, slope * x)


def discriminator_kernel(x_ref, w1_ref, b1_ref, w2_ref, b2_ref,
                         w3_ref, b3_ref, o_ref):
    x = x_ref[...].astype(jnp.float32)

    # fc1 + LeakyReLU (+ dropout p=0.4 -> identity at inference)
    h1 = jnp.dot(x, w1_ref[...], preferred_element_type=jnp.float32) + b1_ref[...]
    h1 = _leaky_relu(h1)

    # fc2 + LeakyReLU
    h2 = jnp.dot(h1, w2_ref[...], preferred_element_type=jnp.float32) + b2_ref[...]
    h2 = _leaky_relu(h2)

    # fc3 + sigmoid: N=1 output -> VPU multiply + lane reduction (no MXU pass)
    logits = jnp.sum(h2 * w3_ref[...], axis=-1, keepdims=True) + b3_ref[...]
    o_ref[...] = jax.nn.sigmoid(logits).astype(o_ref.dtype)


def discriminator_forward(x, params, *, max_tb=2048):
    """x: (B, input_size) float32. Returns (B, 1) float32 in [0, 1]."""
    w1, b1, w2, b2, w3_row, b3 = params
    B, F = x.shape

    # Tile the batch: TB multiple of 8 (sublane), large enough to amortize the
    # ~0.35 us per-grid-step overhead, small enough to bound VMEM.
    TB = min(max_tb, _round_up(B, 8))
    Bp = _round_up(B, TB)
    if Bp != B:
        x = jnp.pad(x, ((0, Bp - B), (0, 0)))

    grid = (Bp // TB,)
    const = lambda i: (0, 0)   # weights/biases: resident block, no re-DMA

    out = pl.pallas_call(
        discriminator_kernel,
        out_shape=jax.ShapeDtypeStruct((Bp, 1), jnp.float32),
        grid=grid,
        in_specs=[
            pl.BlockSpec((TB, F), lambda i: (i, 0)),          # x (streamed)
            pl.BlockSpec((F, _HPAD), const),                  # W1
            pl.BlockSpec((1, _HPAD), const),                  # b1
            pl.BlockSpec((_HPAD, _HPAD), const),              # W2
            pl.BlockSpec((1, _HPAD), const),                  # b2
            pl.BlockSpec((1, _HPAD), const),                  # W3 (as a row)
            pl.BlockSpec((1, 1), const),                      # b3
        ],
        out_specs=pl.BlockSpec((TB, 1), lambda i: (i, 0)),
        compiler_params=pltpu.CompilerParams(
            dimension_semantics=("parallel",)),
    )(x, w1, b1, w2, b2, w3_row, b3)

    return out[:B]


def init_params(key, input_size):
    """Deterministic init mimicking PyTorch nn.Linear default
    (uniform(-1/sqrt(fan_in), +1/sqrt(fan_in))), zero-padded to 128 lanes."""
    def linear(k, fan_in, fan_out):
        kw, kb = jax.random.split(k)
        bound = 1.0 / np.sqrt(fan_in)
        # stored as (in, out) so the kernel does x @ W
        w = jax.random.uniform(kw, (fan_in, fan_out), jnp.float32, -bound, bound)
        b = jax.random.uniform(kb, (fan_out,), jnp.float32, -bound, bound)
        return w, b

    k1, k2, k3 = jax.random.split(key, 3)
    w1, b1 = linear(k1, input_size, 100)
    w2, b2 = linear(k2, 100, 50)
    w3, b3 = linear(k3, 50, 1)

    # Zero-pad hidden dims to 128 lanes; padded bias entries are 0 so padded
    # activation lanes stay exactly 0 through LeakyReLU and contribute nothing.
    w1p = jnp.zeros((input_size, _HPAD), jnp.float32).at[:, :100].set(w1)
    b1p = jnp.zeros((1, _HPAD), jnp.float32).at[0, :100].set(b1)
    w2p = jnp.zeros((_HPAD, _HPAD), jnp.float32).at[:100, :50].set(w2)
    b2p = jnp.zeros((1, _HPAD), jnp.float32).at[0, :50].set(b2)
    w3row = jnp.zeros((1, _HPAD), jnp.float32).at[0, :50].set(w3[:, 0])
    b3p = b3.reshape(1, 1)
    return (w1p, b1p, w2p, b2p, w3row, b3p)


def _reference_forward(x, params):
    """Pure-JAX reference with the same (padded) parameters."""
    w1, b1, w2, b2, w3_row, b3 = params
    h1 = _leaky_relu(x @ w1 + b1)
    h2 = _leaky_relu(h1 @ w2 + b2)
    logits = jnp.sum(h2 * w3_row, axis=-1, keepdims=True) + b3
    return jax.nn.sigmoid(logits)


def _check(out, ref, shape):
    assert out.shape == shape
    assert bool(jnp.all(jnp.isfinite(out)))
    assert bool(jnp.all((out >= 0.0) & (out <= 1.0)))
    assert bool(jnp.allclose(out, ref, atol=1e-5, rtol=1e-5))


if __name__ == "__main__":
    key = jax.random.PRNGKey(0)
    k_in, k_in2, k_par = jax.random.split(key, 3)

    input_size = 16
    params = init_params(k_par, input_size)

    # Small case (single grid step, padded 2 -> 8 rows).
    batch = 2
    x = jax.random.normal(k_in, (batch, input_size), dtype=jnp.float32)
    out = jax.block_until_ready(discriminator_forward(x, params))
    _check(out, _reference_forward(x, params), (batch, 1))

    # Multi-step grid + batch padding path (TB=64 -> grid of 4, 56 padded rows).
    batch2 = 200
    x2 = jax.random.normal(k_in2, (batch2, input_size), dtype=jnp.float32)
    out2 = jax.block_until_ready(discriminator_forward(x2, params, max_tb=64))
    _check(out2, _reference_forward(x2, params), (batch2, 1))

    print("KERNEL_OK")
</pallas_src>

<mosaic_0001>
module attributes {stable_mosaic.version = 11 : i64} {
  func.func @discriminator_kernel(%arg0: i32, %arg1: memref<8x16xf32, #tpu.memory_space<vmem>>, %arg2: memref<16x128xf32, #tpu.memory_space<vmem>>, %arg3: memref<1x128xf32, #tpu.memory_space<vmem>>, %arg4: memref<128x128xf32, #tpu.memory_space<vmem>>, %arg5: memref<1x128xf32, #tpu.memory_space<vmem>>, %arg6: memref<1x128xf32, #tpu.memory_space<vmem>>, %arg7: memref<1x1xf32, #tpu.memory_space<vmem>>, %arg8: memref<8x1xf32, #tpu.memory_space<vmem>>) attributes {dimension_semantics = [#tpu.dimension_semantics<parallel>], iteration_bounds = array<i64: 1>, scalar_prefetch = 0 : i64, scratch_operands = 0 : i64, tpu.core_type = #tpu.core_type<tc>, window_params = [{transform_indices = @transform_0, window_bounds = array<i64: 8, 16>}, {pipeline_mode = #tpu.pipeline_mode<synchronous>, transform_indices = @transform_1, window_bounds = array<i64: 16, 128>}, {pipeline_mode = #tpu.pipeline_mode<synchronous>, transform_indices = @transform_2, window_bounds = array<i64: 1, 128>}, {pipeline_mode = #tpu.pipeline_mode<synchronous>, transform_indices = @transform_3, window_bounds = array<i64: 128, 128>}, {pipeline_mode = #tpu.pipeline_mode<synchronous>, transform_indices = @transform_4, window_bounds = array<i64: 1, 128>}, {pipeline_mode = #tpu.pipeline_mode<synchronous>, transform_indices = @transform_5, window_bounds = array<i64: 1, 128>}, {pipeline_mode = #tpu.pipeline_mode<synchronous>, transform_indices = @transform_6, window_bounds = array<i64: 1, 1>}, {transform_indices = @transform_7, window_bounds = array<i64: 8, 1>}]} {
    %c0 = arith.constant 0 : index
    %c0_0 = arith.constant 0 : index
    %0 = vector.load %arg1[%c0, %c0_0] : memref<8x16xf32, #tpu.memory_space<vmem>>, vector<8x16xf32>
    %c0_1 = arith.constant 0 : index
    %c0_2 = arith.constant 0 : index
    %1 = vector.load %arg2[%c0_1, %c0_2] : memref<16x128xf32, #tpu.memory_space<vmem>>, vector<16x128xf32>
    %cst = arith.constant dense<0.000000e+00> : vector<8x128xf32>
    %2 = tpu.matmul %0, %1, %cst {dimension_numbers = #tpu.dot_dimension_numbers<[1], [0], [0], [1], [0, 0, 1, 1], [], []>} : vector<8x16xf32>, vector<16x128xf32>, vector<8x128xf32> -> vector<8x128xf32>
    %c0_3 = arith.constant 0 : index
    %c0_4 = arith.constant 0 : index
    %3 = vector.load %arg3[%c0_3, %c0_4] : memref<1x128xf32, #tpu.memory_space<vmem>>, vector<1x128xf32>
    %4 = vector.broadcast %3 : vector<1x128xf32> to vector<8x128xf32>
    %5 = arith.addf %2, %4 : vector<8x128xf32>
    %cst_5 = arith.constant 0.000000e+00 : f32
    %6 = vector.broadcast %cst_5 : f32 to vector<8x128xf32>
    %7 = arith.cmpf ogt, %5, %6 : vector<8x128xf32>
    %cst_6 = arith.constant 0.00999999977 : f32
    %8 = vector.broadcast %cst_6 : f32 to vector<8x128xf32>
    %9 = arith.mulf %8, %5 : vector<8x128xf32>
    %10 = arith.select %7, %5, %9 : vector<8x128xi1>, vector<8x128xf32>
    %c0_7 = arith.constant 0 : index
    %c0_8 = arith.constant 0 : index
    %11 = vector.load %arg4[%c0_7, %c0_8] : memref<128x128xf32, #tpu.memory_space<vmem>>, vector<128x128xf32>
    %cst_9 = arith.constant dense<0.000000e+00> : vector<8x128xf32>
    %12 = tpu.matmul %10, %11, %cst_9 {dimension_numbers = #tpu.dot_dimension_numbers<[1], [0], [0], [1], [0, 0, 1, 1], [], []>} : vector<8x128xf32>, vector<128x128xf32>, vector<8x128xf32> -> vector<8x128xf32>
    %c0_10 = arith.constant 0 : index
    %c0_11 = arith.constant 0 : index
    %13 = vector.load %arg5[%c0_10, %c0_11] : memref<1x128xf32, #tpu.memory_space<vmem>>, vector<1x128xf32>
    %14 = vector.broadcast %13 : vector<1x128xf32> to vector<8x128xf32>
    %15 = arith.addf %12, %14 : vector<8x128xf32>
    %cst_12 = arith.constant 0.000000e+00 : f32
    %16 = vector.broadcast %cst_12 : f32 to vector<8x128xf32>
    %17 = arith.cmpf ogt, %15, %16 : vector<8x128xf32>
    %cst_13 = arith.constant 0.00999999977 : f32
    %18 = vector.broadcast %cst_13 : f32 to vector<8x128xf32>
    %19 = arith.mulf %18, %15 : vector<8x128xf32>
    %20 = arith.select %17, %15, %19 : vector<8x128xi1>, vector<8x128xf32>
    %c0_14 = arith.constant 0 : index
    %c0_15 = arith.constant 0 : index
    %21 = vector.load %arg6[%c0_14, %c0_15] : memref<1x128xf32, #tpu.memory_space<vmem>>, vector<1x128xf32>
    %22 = vector.broadcast %21 : vector<1x128xf32> to vector<8x128xf32>
    %23 = arith.mulf %20, %22 : vector<8x128xf32>
    %cst_16 = arith.constant dense<0.000000e+00> : vector<8xf32>
    %24 = vector.multi_reduction <add>, %23, %cst_16 [1] : vector<8x128xf32> to vector<8xf32>
    %25 = vector.shape_cast %24 : vector<8xf32> to vector<8x1xf32>
    %c0_17 = arith.constant 0 : index
    %c0_18 = arith.constant 0 : index
    %26 = vector.load %arg7[%c0_17, %c0_18] : memref<1x1xf32, #tpu.memory_space<vmem>>, vector<1x1xf32>
    %27 = vector.broadcast %26 : vector<1x1xf32> to vector<8x1xf32>
    %28 = arith.addf %25, %27 : vector<8x1xf32>
    %29 = arith.negf %28 : vector<8x1xf32>
    %30 = math.exp %29 : vector<8x1xf32>
    %cst_19 = arith.constant 1.000000e+00 : f32
    %31 = vector.broadcast %cst_19 : f32 to vector<8x1xf32>
    %32 = arith.addf %31, %30 : vector<8x1xf32>
    %33 = arith.divf %31, %32 : vector<8x1xf32>
    %c0_20 = arith.constant 0 : index
    %c0_21 = arith.constant 0 : index
    %34 = vector.load %arg8[%c0_20, %c0_21] : memref<8x1xf32, #tpu.memory_space<vmem>>, vector<8x1xf32>
    tpu.vector_store %arg8[%c0_20, %c0_21], %33 {strides = array<i32>} : memref<8x1xf32, #tpu.memory_space<vmem>>, vector<8x1xf32>,
    return
  }
  func.func @transform_0(%arg0: i32) -> (i32, i32) {
    %c0_i32 = arith.constant 0 : i32
    %c0_i32_0 = arith.constant 0 : i32
    return %arg0, %c0_i32 : i32, i32
  }
  func.func @transform_1(%arg0: i32) -> (i32, i32) {
    %c0_i32 = arith.constant 0 : i32
    %c0_i32_0 = arith.constant 0 : i32
    %c0_i32_1 = arith.constant 0 : i32
    return %c0_i32, %c0_i32_0 : i32, i32
  }
  func.func @transform_2(%arg0: i32) -> (i32, i32) {
    %c0_i32 = arith.constant 0 : i32
    %c0_i32_0 = arith.constant 0 : i32
    %c0_i32_1 = arith.constant 0 : i32
    return %c0_i32, %c0_i32_0 : i32, i32
  }
  func.func @transform_3(%arg0: i32) -> (i32, i32) {
    %c0_i32 = arith.constant 0 : i32
    %c0_i32_0 = arith.constant 0 : i32
    %c0_i32_1 = arith.constant 0 : i32
    return %c0_i32, %c0_i32_0 : i32, i32
  }
  func.func @transform_4(%arg0: i32) -> (i32, i32) {
    %c0_i32 = arith.constant 0 : i32
    %c0_i32_0 = arith.constant 0 : i32
    %c0_i32_1 = arith.constant 0 : i32
    return %c0_i32, %c0_i32_0 : i32, i32
  }
  func.func @transform_5(%arg0: i32) -> (i32, i32) {
    %c0_i32 = arith.constant 0 : i32
    %c0_i32_0 = arith.constant 0 : i32
    %c0_i32_1 = arith.constant 0 : i32
    return %c0_i32, %c0_i32_0 : i32, i32
  }
  func.func @transform_6(%arg0: i32) -> (i32, i32) {
    %c0_i32 = arith.constant 0 : i32
    %c0_i32_0 = arith.constant 0 : i32
    %c0_i32_1 = arith.constant 0 : i32
    return %c0_i32, %c0_i32_0 : i32, i32
  }
  func.func @transform_7(%arg0: i32) -> (i32, i32) {
    %c0_i32 = arith.constant 0 : i32
    %c0_i32_0 = arith.constant 0 : i32
    return %arg0, %c0_i32 : i32, i32
  }
}

</mosaic_0001>

<llo_original>
// kernel: tpu_custom_call.1
$region0: #{tpu_custom_call.1}
  #allocation0 [shape = 'u32[]', space=smem, size = 0x4, offset = 0x4, fixed_abs, tag = 'smem constant byte address 0x4 - core index']
  #allocation1 [shape = 'u32[144,128]{1,0:T(1,128)}', space=vmem, size = 0x12000, scoped, tag = 'internal scratch']
  #allocation2 [shape = 'f32[1,1]{1,0:T(1,128)S(1)}', space=vmem, size = 0x200, scoped, tag = 'scoped memory for tpu_custom_call.1']
  %s0 = inlined_call_operand.hbm [shape: f32[8,16], index: 0, kind: input, shape index: {}]
  %s1 = inlined_call_operand.hbm [shape: f32[16,128], index: 1, kind: input, shape index: {}]
  %s2 = inlined_call_operand.vmem [shape: f32[1,128], index: 2, kind: input, shape index: {}]
  %s3 = inlined_call_operand.hbm [shape: f32[128,128], index: 3, kind: input, shape index: {}]
  %s4 = inlined_call_operand.vmem [shape: f32[1,128], index: 4, kind: input, shape index: {}]
  %s5 = inlined_call_operand.vmem [shape: f32[1,128], index: 5, kind: input, shape index: {}]
  %s6 = inlined_call_operand.<no memory space> [shape: f32[1,1], index: 6, kind: input, shape index: {}]
  %s7 = inlined_call_operand.vmem [shape: f32[8,1], index: 7, kind: output, shape index: {}]
  %s8 = sld [smem:[#allocation0]]
  $region50: #{tpu_custom_call.1} parent=0
    _
  %s10 = ssub.s32 1, %s8
  %s11 = scalar_select 0, %s10, %s8
  %v12 = vstv %s6
  %13 = vst [vmem:[#allocation2] sm:$0x1] %v12
  $region1: #{tpu_custom_call.1} parent=0
    #allocation3 [shape = 'u8[4096]{0}', space=vmem, size = 0x1000, scoped, tag = 'input window, operand 0, single buffered']
    #allocation4 [shape = 's32[1]{0}', space=sflag, size = 0x4, scoped, tag = 'scoped memory for tpu_custom_call.1']
    #allocation5 [shape = 'u8[8192]{0}', space=vmem, size = 0x2000, scoped, tag = 'input window, operand 1, single buffered']
    #allocation6 [shape = 's32[1]{0}', space=sflag, size = 0x4, scoped, tag = 'scoped memory for tpu_custom_call.1']
    #allocation7 [shape = 'u8[65536]{0}', space=vmem, size = 0x10000, scoped, tag = 'input window, operand 3, single buffered']
    %14 = vsyncpa [#allocation4], 0
    %15 = vsyncpa [#allocation6], 0
    // Predicated region
    $region2: #{tpu_custom_call.1} parent=1 // pred_check
      _
    $region3: #{tpu_custom_call.1} parent=1 // pred_check_branch
      %17 = sbr.rel (0) target = $region5
    $region4: #{tpu_custom_call.1} parent=1 // pred_region
      %s19 = ssub.s32 128, 128
      %20 = vsyncadd [#allocation4], %s19
      %s22 = sshll.u32 [#allocation3], 4
      %s23 = int_to_ptr.vmem [resolvable:$true] %s22
      %25 = dma.hbm_to_vmem [thread:$0]  %s0, 128, %s23, [#allocation4]
    $region5: #{tpu_custom_call.1} parent=1 // pred_fallthru
      _
    // Predicated region
    $region6: #{tpu_custom_call.1} parent=1 // pred_check
      _
    $region7: #{tpu_custom_call.1} parent=1 // pred_check_branch
      %27 = sbr.rel (0) target = $region9
    $region8: #{tpu_custom_call.1} parent=1 // pred_region
      %s29 = ssub.s32 256, 256
      %30 = vsyncadd [#allocation6], %s29
      %s31 = sshll.u32 [#allocation5], 4
      %s32 = int_to_ptr.vmem [resolvable:$true] %s31
      %37 = dma.hbm_to_vmem [thread:$0]  %s1, 256, %s32, [#allocation6], 128, 128, 8
    $region9: #{tpu_custom_call.1} parent=1 // pred_fallthru
      _
    // Predicated region
    $region10: #{tpu_custom_call.1} parent=1 // pred_check
      _
    $region11: #{tpu_custom_call.1} parent=1 // pred_check_branch
      %39 = sbr.rel (0) target = $region13
    $region12: #{tpu_custom_call.1} parent=1 // pred_region
      _
    $region13: #{tpu_custom_call.1} parent=1 // pred_fallthru
      _
    // Predicated region
    $region14: #{tpu_custom_call.1} parent=1 // pred_check
      _
    $region15: #{tpu_custom_call.1} parent=1 // pred_check_branch
      %41 = sbr.rel (0) target = $region17
    $region16: #{tpu_custom_call.1} parent=1 // pred_region
      %s43 = ssub.s32 2048, 2048
      %44 = vsyncadd [#allocation6], %s43
      %s45 = sshll.u32 [#allocation7], 4
      %s46 = int_to_ptr.vmem [resolvable:$true] %s45
      %51 = dma.hbm_to_vmem [thread:$0]  %s3, 2048, %s46, [#allocation6], 128, 128, 8
    $region17: #{tpu_custom_call.1} parent=1 // pred_fallthru
      _
    // Predicated region
    $region18: #{tpu_custom_call.1} parent=1 // pred_check
      _
    $region19: #{tpu_custom_call.1} parent=1 // pred_check_branch
      %53 = sbr.rel (0) target = $region21
    $region20: #{tpu_custom_call.1} parent=1 // pred_region
      _
    $region21: #{tpu_custom_call.1} parent=1 // pred_fallthru
      _
    // Predicated region
    $region22: #{tpu_custom_call.1} parent=1 // pred_check
      _
    $region23: #{tpu_custom_call.1} parent=1 // pred_check_branch
      %55 = sbr.rel (0) target = $region25
    $region24: #{tpu_custom_call.1} parent=1 // pred_region
      _
    $region25: #{tpu_custom_call.1} parent=1 // pred_fallthru
      _
    // Predicated region
    $region26: #{tpu_custom_call.1} parent=1 // pred_check
      _
    $region27: #{tpu_custom_call.1} parent=1 // pred_check_branch
      %57 = sbr.rel (0) target = $region29
    $region28: #{tpu_custom_call.1} parent=1 // pred_region
      _
    $region29: #{tpu_custom_call.1} parent=1 // pred_fallthru
      _
    // Predicated region
    $region30: #{tpu_custom_call.1} parent=1 // pred_check
      _
    $region31: #{tpu_custom_call.1} parent=1 // pred_check_branch
      %59 = sbr.rel (0) target = $region33
    $region32: #{tpu_custom_call.1} parent=1 // pred_region
      %60 = dma.done [#allocation4], 128
    $region33: #{tpu_custom_call.1} parent=1 // pred_fallthru
      _
    // Predicated region
    $region34: #{tpu_custom_call.1} parent=1 // pred_check
      _
    $region35: #{tpu_custom_call.1} parent=1 // pred_check_branch
      %62 = sbr.rel (0) target = $region37
    $region36: #{tpu_custom_call.1} parent=1 // pred_region
      %63 = dma.done [#allocation6], 256
    $region37: #{tpu_custom_call.1} parent=1 // pred_fallthru
      _
    // Predicated region
    $region38: #{tpu_custom_call.1} parent=1 // pred_check
      _
    $region39: #{tpu_custom_call.1} parent=1 // pred_check_branch
      %65 = sbr.rel (0) target = $region41
    $region40: #{tpu_custom_call.1} parent=1 // pred_region
      %66 = dma.done [#allocation6], 2048
    $region41: #{tpu_custom_call.1} parent=1 // pred_fallthru
      _
    %v67 = vld [vmem:[#allocation3] sm:$0xff]
    %v68 = vld [vmem:[#allocation5] sm:$0xff]
    %v69 = vld [vmem:[#allocation5 + $0x8] sm:$0xff]
    %v70 = vld [vmem:[%s2] sm:$0x1]
    %v72 = vlaneseq
    %v73 = vshrl.u32 %v72, 7
    %v74 = vsub.s32 0, %v73
    %v75 = vrot.slane %v70, %v74
    %vm77 = vcmask 130048
    %v79 = vsel %vm77, %v67, 0
    %81 = vmatprep.subr.mxu0 0.0
    %82 = vmatpush1.msra.mxu0 %v68
    %83 = vmatprep.subr.mxu0 0.0
    %84 = vmatpush1.msra.mxu0 %v69
    %85 = vmatprep.subr.mxu0 0.0
    %86 = vmatpush1.msra.mxu0 0.0
    %87 = vmatprep.subr.mxu0 0.0
    %88 = vmatpush1.msra.mxu0 0.0
    %89 = vmatprep.subr.mxu0 0.0
    %90 = vmatpush1.msra.mxu0 0.0
    %91 = vmatprep.subr.mxu0 0.0
    %92 = vmatpush1.msra.mxu0 0.0
    %93 = vmatprep.subr.mxu0 0.0
    %94 = vmatpush1.msra.mxu0 0.0
    %95 = vmatprep.subr.mxu0 0.0
    %96 = vmatpush1.msra.mxu0 0.0
    %97 = vmatprep.subr.mxu0 0.0
    %98 = vmatpush1.msra.mxu0 0.0
    %99 = vmatprep.subr.mxu0 0.0
    %100 = vmatpush1.msra.mxu0 0.0
    %101 = vmatprep.subr.mxu0 0.0
    %102 = vmatpush1.msra.mxu0 0.0
    %103 = vmatprep.subr.mxu0 0.0
    %104 = vmatpush1.msra.mxu0 0.0
    %105 = vmatprep.subr.mxu0 0.0
    %106 = vmatpush1.msra.mxu0 0.0
    %107 = vmatprep.subr.mxu0 0.0
    %108 = vmatpush1.msra.mxu0 0.0
    %109 = vmatprep.subr.mxu0 0.0
    %110 = vmatpush1.msra.mxu0 0.0
    %111 = vmatprep.subr.mxu0 0.0
    %112 = vmatpush1.msra.mxu0 0.0
    %113 = vmatprep.subr.mxu0 0.0
    %114 = vmatpush1.msra.mxu0 0.0
    %115 = vmatprep.subr.mxu0 0.0
    %116 = vmatpush1.msra.mxu0 0.0
    %117 = vmatprep.subr.mxu0 0.0
    %118 = vmatpush1.msra.mxu0 0.0
    %119 = vmatprep.subr.mxu0 0.0
    %120 = vmatpush1.msra.mxu0 0.0
    %121 = vmatprep.subr.mxu0 0.0
    %122 = vmatpush1.msra.mxu0 0.0
    %123 = vmatprep.subr.mxu0 0.0
    %124 = vmatpush1.msra.mxu0 0.0
    %125 = vmatprep.subr.mxu0 0.0
    %126 = vmatpush1.msra.mxu0 0.0
    %127 = vmatprep.subr.mxu0 0.0
    %128 = vmatpush1.msra.mxu0 0.0
    %129 = vmatprep.subr.mxu0 0.0
    %130 = vmatpush1.msra.mxu0 0.0
    %131 = vmatprep.subr.mxu0 0.0
    %132 = vmatpush1.msra.mxu0 0.0
    %133 = vmatprep.subr.mxu0 0.0
    %134 = vmatpush1.msra.mxu0 0.0
    %135 = vmatprep.subr.mxu0 0.0
    %136 = vmatpush1.msra.mxu0 0.0
    %137 = vmatprep.subr.mxu0 0.0
    %138 = vmatpush1.msra.mxu0 0.0
    %139 = vmatprep.subr.mxu0 0.0
    %140 = vmatpush1.msra.mxu0 0.0
    %141 = vmatprep.subr.mxu0 0.0
    %142 = vmatpush1.msra.mxu0 0.0
    %143 = vmatprep.subr.mxu0 0.0
    %144 = vmatpush1.msra.mxu0 0.0
    %145 = vmatprep.mubr.f32.mxu0 0.0
    %146 = vmatmul.mubr.f32.gmra.mrb[0].mxu0 %v79
    %v147 = vpop.f32.mrb[0].mxu0
    %v148 = vadd.f32 %v75, %v147
    %v149 = vpop.f32.mrb[0].mxu0
    %150 = vdwg.mxu0
    %vm151 = vcmp.gt.f32.partialorder %v148, 0.0
    %v152 = vmul.f32 %v148, 0.01
    %v153 = vsel %vm151, %v148, %v152
    %v154 = vld [vmem:[#allocation7] sm:$0xff]
    %v155 = vld [vmem:[#allocation7 + $0x8] sm:$0xff]
    %v156 = vld [vmem:[#allocation7 + $0x10] sm:$0xff]
    %v157 = vld [vmem:[#allocation7 + $0x18] sm:$0xff]
    %v158 = vld [vmem:[#allocation7 + $0x20] sm:$0xff]
    %v159 = vld [vmem:[#allocation7 + $0x28] sm:$0xff]
    %v160 = vld [vmem:[#allocation7 + $0x30] sm:$0xff]
    %v161 = vld [vmem:[#allocation7 + $0x38] sm:$0xff]
    %v162 = vld [vmem:[#allocation7 + $0x40] sm:$0xff]
    %v163 = vld [vmem:[#allocation7 + $0x48] sm:$0xff]
    %v164 = vld [vmem:[#allocation7 + $0x50] sm:$0xff]
    %v165 = vld [vmem:[#allocation7 + $0x58] sm:$0xff]
    %v166 = vld [vmem:[#allocation7 + $0x60] sm:$0xff]
    %v167 = vld [vmem:[#allocation7 + $0x68] sm:$0xff]
    %v168 = vld [vmem:[#allocation7 + $0x70] sm:$0xff]
    %v169 = vld [vmem:[#allocation7 + $0x78] sm:$0xff]
    %v170 = vld [vmem:[%s4] sm:$0x1]
    %v172 = vlaneseq
    %v173 = vshrl.u32 %v172, 7
    %v174 = vsub.s32 0, %v173
    %v175 = vrot.slane %v170, %v174
    %177 = vmatprep.subr.mxu0 0.0
    %178 = vmatpush1.msra.mxu0 %v154
    %179 = vmatprep.subr.mxu0 0.0
    %180 = vmatpush1.msra.mxu0 %v155
    %181 = vmatprep.subr.mxu0 0.0
    %182 = vmatpush1.msra.mxu0 %v156
    %183 = vmatprep.subr.mxu0 0.0
    %184 = vmatpush1.msra.mxu0 %v157
    %185 = vmatprep.subr.mxu0 0.0
    %186 = vmatpush1.msra.mxu0 %v158
    %187 = vmatprep.subr.mxu0 0.0
    %188 = vmatpush1.msra.mxu0 %v159
    %189 = vmatprep.subr.mxu0 0.0
    %190 = vmatpush1.msra.mxu0 %v160
    %191 = vmatprep.subr.mxu0 0.0
    %192 = vmatpush1.msra.mxu0 %v161
    %193 = vmatprep.subr.mxu0 0.0
    %194 = vmatpush1.msra.mxu0 %v162
    %195 = vmatprep.subr.mxu0 0.0
    %196 = vmatpush1.msra.mxu0 %v163
    %197 = vmatprep.subr.mxu0 0.0
    %198 = vmatpush1.msra.mxu0 %v164
    %199 = vmatprep.subr.mxu0 0.0
    %200 = vmatpush1.msra.mxu0 %v165
    %201 = vmatprep.subr.mxu0 0.0
    %202 = vmatpush1.msra.mxu0 %v166
    %203 = vmatprep.subr.mxu0 0.0
    %204 = vmatpush1.msra.mxu0 %v167
    %205 = vmatprep.subr.mxu0 0.0
    %206 = vmatpush1.msra.mxu0 %v168
    %207 = vmatprep.subr.mxu0 0.0
    %208 = vmatpush1.msra.mxu0 %v169
    %209 = vmatprep.subr.mxu0 0.0
    %210 = vmatpush1.msra.mxu0 0.0
    %211 = vmatprep.subr.mxu0 0.0
    %212 = vmatpush1.msra.mxu0 0.0
    %213 = vmatprep.subr.mxu0 0.0
    %214 = vmatpush1.msra.mxu0 0.0
    %215 = vmatprep.subr.mxu0 0.0
    %216 = vmatpush1.msra.mxu0 0.0
    %217 = vmatprep.subr.mxu0 0.0
    %218 = vmatpush1.msra.mxu0 0.0
    %219 = vmatprep.subr.mxu0 0.0
    %220 = vmatpush1.msra.mxu0 0.0
    %221 = vmatprep.subr.mxu0 0.0
    %222 = vmatpush1.msra.mxu0 0.0
    %223 = vmatprep.subr.mxu0 0.0
    %224 = vmatpush1.msra.mxu0 0.0
    %225 = vmatprep.subr.mxu0 0.0
    %226 = vmatpush1.msra.mxu0 0.0
    %227 = vmatprep.subr.mxu0 0.0
    %228 = vmatpush1.msra.mxu0 0.0
    %229 = vmatprep.subr.mxu0 0.0
    %230 = vmatpush1.msra.mxu0 0.0
    %231 = vmatprep.subr.mxu0 0.0
    %232 = vmatpush1.msra.mxu0 0.0
    %233 = vmatprep.subr.mxu0 0.0
    %234 = vmatpush1.msra.mxu0 0.0
    %235 = vmatprep.subr.mxu0 0.0
    %236 = vmatpush1.msra.mxu0 0.0
    %237 = vmatprep.subr.mxu0 0.0
    %238 = vmatpush1.msra.mxu0 0.0
    %239 = vmatprep.subr.mxu0 0.0
    %240 = vmatpush1.msra.mxu0 0.0
    %241 = vmatprep.mubr.f32.mxu0 0.0
    %242 = vmatmul.mubr.f32.gmra.mrb[0].mxu0 %v153
    %v243 = vpop.f32.mrb[0].mxu0
    %v244 = vadd.f32 %v175, %v243
    %v245 = vpop.f32.mrb[0].mxu0
    %246 = vdwg.mxu0
    %vm247 = vcmp.gt.f32.partialorder %v244, 0.0
    %v248 = vmul.f32 %v244, 0.01
    %v249 = vsel %vm247, %v244, %v248
    %v250 = vld [vmem:[%s5] sm:$0x1]
    %v252 = vlaneseq
    %v253 = vshrl.u32 %v252, 7
    %v254 = vsub.s32 0, %v253
    %v255 = vrot.slane %v250, %v254
    %v257 = vmul.f32 %v249, %v255
    %258 = vadd.xlane.f32.xlu0 %v257
    %v259 = vpop.xlane.xlu0 %258
    %v260 = vld [vmem:[#allocation2] sm:$0x1]
    %v262 = vlaneseq
    %v263 = vshrl.u32 %v262, 7
    %v264 = vsub.s32 0, %v263
    %v265 = vrot.slane %v260, %v264
    %v267 = vadd.f32 %v259, %v265
    %v268 = vxor.u32 %v267, 2147483648
    %v269 = vmul.f32 %v268, 1.442695
    %v270 = vpow.pop %v269
    %v271 = vadd.f32 %v270, 1.0
    %v272 = vrcp.pop %v271
    %v273 = vmul.f32 1.0, %v272
    %vm274 = vcmask 7168
    %275 = vst.msk [vmem:[%s7] sm:$0xff] %vm274, %v273
    // Predicated region
    $region42: #{tpu_custom_call.1} parent=1 // pred_check
      _
    $region43: #{tpu_custom_call.1} parent=1 // pred_check_branch
      %277 = sbr.rel (0) target = $region45
    $region44: #{tpu_custom_call.1} parent=1 // pred_region
      _
    $region45: #{tpu_custom_call.1} parent=1 // pred_fallthru
      _
    // Predicated region
    $region46: #{tpu_custom_call.1} parent=1 // pred_check
      _
    $region47: #{tpu_custom_call.1} parent=1 // pred_check_branch
      %279 = sbr.rel (0) target = $region49
    $region48: #{tpu_custom_call.1} parent=1 // pred_region
      _
    $region49: #{tpu_custom_call.1} parent=1 // pred_fallthru
      _
    %280 = vsyncpa [#allocation4], 1
    %281 = vsyncpa [#allocation6], 1

</llo_original>
